<compile_context>
chip_gen: v7x
topology: tpu7x:2x2x1
jax: 0.10.0
libtpu: 0.0.40
codegen_flags: <defaults>
</compile_context>

<pallas_src>
import jax
import jax.numpy as jnp
from jax.experimental import pallas as pl
from jax.experimental.pallas import tpu as pltpu


def linear_kernel(x_ref, w_ref, b_ref, o_ref):
    # x_ref: (1, N) f32 in VMEM (samples lane-dense along the last axis)
    # w_ref: (1,) f32 in SMEM, b_ref: (1,) f32 in SMEM
    # One VPU multiply-add; scalar operands ride the scalar path.
    o_ref[...] = x_ref[...] * w_ref[0] + b_ref[0]


@jax.jit
def linear_forward(x, weight, bias):
    """x: (N, 1) f32, weight: (1, 1) f32, bias: (1,) f32 -> (N, 1) f32.

    Matches torch.nn.Linear(1, 1): y = x @ W^T + b.
    """
    n = x.shape[0]

    # Lane-dense presentation: all samples along the lane axis of one block.
    # No pad / slice: block_shape == full array dims, so any N is legal here.
    x_flat = x.reshape(1, n)
    w_s = weight.reshape(1)  # W^T is a no-op for a (1, 1) weight
    b_s = bias.reshape(1)

    y_flat = pl.pallas_call(
        linear_kernel,
        out_shape=jax.ShapeDtypeStruct((1, n), jnp.float32),
        in_specs=[
            pl.BlockSpec((1, n), lambda: (0, 0)),
            pl.BlockSpec(memory_space=pltpu.SMEM),
            pl.BlockSpec(memory_space=pltpu.SMEM),
        ],
        out_specs=pl.BlockSpec((1, n), lambda: (0, 0)),
        # NOTE (scaled-N path, kernel is HBM-bandwidth bound at any scale):
        #   reshape x to (N // 128, 128), grid=(pl.cdiv(N, rows_per_block*128),)
        #   with block_shape (rows_per_block, 128) where rows_per_block is a
        #   multiple of 8 (full (8,128) tiles -> unmasked vst, 512+-wide DMAs),
        #   dimension_semantics=("parallel",) so v7x's 2 TCs split the blocks,
        #   and block bytes <= ~4-8 MiB (2 arrays x 2 buffers must fit v7x's
        #   64 MiB VMEM) or raise vmem_limit_bytes via pltpu.CompilerParams.
    )(x_flat, w_s, b_s)

    return y_flat.reshape(n, 1)


if __name__ == "__main__":
    # Deterministic parameter init (nn.Linear(1, 1): fan_in=1 -> bound=1).
    key = jax.random.PRNGKey(0)
    kw, kb = jax.random.split(key)
    weight = jax.random.uniform(kw, (1, 1), jnp.float32, minval=-1.0, maxval=1.0)
    bias = jax.random.uniform(kb, (1,), jnp.float32, minval=-1.0, maxval=1.0)

    # Input matching the reference script: linspace(-5, 5, 100).unsqueeze(1) -> (100, 1).
    x = jnp.linspace(-5.0, 5.0, 100, dtype=jnp.float32).reshape(100, 1)

    y = jax.block_until_ready(linear_forward(x, weight, bias))

    # Sanity check against plain-JAX reference of nn.Linear semantics.
    y_ref = x @ weight.T + bias
    assert y.shape == (100, 1)
    assert jnp.allclose(y, y_ref, atol=1e-5, rtol=1e-5)

    print("KERNEL_OK")
</pallas_src>

<mosaic_0001>
module attributes {stable_mosaic.version = 11 : i64} {
  func.func @linear_kernel(%arg0: memref<1x100xf32, #tpu.memory_space<vmem>>, %arg1: memref<1xf32, #tpu.memory_space<smem>>, %arg2: memref<1xf32, #tpu.memory_space<smem>>, %arg3: memref<1x100xf32, #tpu.memory_space<vmem>>) attributes {dimension_semantics = [], scalar_prefetch = 0 : i64, scratch_operands = 0 : i64, tpu.core_type = #tpu.core_type<tc>} {
    %c0 = arith.constant 0 : index
    %c0_0 = arith.constant 0 : index
    %0 = vector.load %arg0[%c0, %c0_0] : memref<1x100xf32, #tpu.memory_space<vmem>>, vector<1x100xf32>
    %c0_1 = arith.constant 0 : index
    %1 = memref.load %arg1[%c0_1] : memref<1xf32, #tpu.memory_space<smem>>
    %2 = vector.broadcast %1 : f32 to vector<1x100xf32>
    %3 = arith.mulf %0, %2 : vector<1x100xf32>
    %c0_2 = arith.constant 0 : index
    %4 = memref.load %arg2[%c0_2] : memref<1xf32, #tpu.memory_space<smem>>
    %5 = vector.broadcast %4 : f32 to vector<1x100xf32>
    %6 = arith.addf %3, %5 : vector<1x100xf32>
    %c0_3 = arith.constant 0 : index
    %c0_4 = arith.constant 0 : index
    %7 = vector.load %arg3[%c0_3, %c0_4] : memref<1x100xf32, #tpu.memory_space<vmem>>, vector<1x100xf32>
    tpu.vector_store %arg3[%c0_3, %c0_4], %6 {strides = array<i32>} : memref<1x100xf32, #tpu.memory_space<vmem>>, vector<1x100xf32>,
    return
  }
}

</mosaic_0001>

<llo_original>
// kernel: linear_forward.1
$region0: #{linear_forward.1}
  #allocation0 [shape = 'u32[]', space=smem, size = 0x4, offset = 0x4, fixed_abs, tag = 'smem constant byte address 0x4 - core index']
  #allocation1 [shape = 'u32[144,128]{1,0:T(1,128)}', space=vmem, size = 0x12000, scoped, tag = 'internal scratch']
  #allocation2 [shape = 'f32[1]{0:T(128)S(6)}', space=smem, size = 0x200, scoped, tag = 'scoped memory for linear_forward.1']
  #allocation3 [shape = 'f32[1]{0:T(128)S(6)}', space=smem, size = 0x200, scoped, tag = 'scoped memory for linear_forward.1']
  %s0 = inlined_call_operand.vmem [shape: f32[1,100], index: 0, kind: input, shape index: {}]
  %s1 = inlined_call_operand.<no memory space> [shape: f32[1], index: 1, kind: input, shape index: {}]
  %s2 = inlined_call_operand.<no memory space> [shape: f32[1], index: 2, kind: input, shape index: {}]
  %s3 = inlined_call_operand.hbm [shape: f32[1,100], index: 3, kind: output, shape index: {}]
  %s4 = sld [smem:[#allocation0]]
  $region22: #{linear_forward.1} parent=0
    _
  %s6 = ssub.s32 1, %s4
  %s7 = scalar_select 0, %s6, %s4
  %8 = sst [smem:[#allocation2]] %s1
  %9 = sst [smem:[#allocation3]] %s2
  $region1: #{linear_forward.1} parent=0
    #allocation4 [shape = 'u8[512]{0}', space=vmem, size = 0x400, scoped, tag = 'output window, operand 0, single buffered']
    #allocation5 [shape = 's32[1]{0}', space=sflag, size = 0x4, scoped, tag = 'scoped memory for linear_forward.1']
    %10 = vsyncpa [#allocation5], 0
    // Predicated region
    $region2: #{linear_forward.1} parent=1 // pred_check
      _
    $region3: #{linear_forward.1} parent=1 // pred_check_branch
      %12 = sbr.rel (0) target = $region5
    $region4: #{linear_forward.1} parent=1 // pred_region
      _
    $region5: #{linear_forward.1} parent=1 // pred_fallthru
      _
    // Predicated region
    $region6: #{linear_forward.1} parent=1 // pred_check
      _
    $region7: #{linear_forward.1} parent=1 // pred_check_branch
      %14 = sbr.rel (0) target = $region9
    $region8: #{linear_forward.1} parent=1 // pred_region
      _
    $region9: #{linear_forward.1} parent=1 // pred_fallthru
      _
    // Predicated region
    $region10: #{linear_forward.1} parent=1 // pred_check
      _
    $region11: #{linear_forward.1} parent=1 // pred_check_branch
      %16 = sbr.rel (0) target = $region13
    $region12: #{linear_forward.1} parent=1 // pred_region
      _
    $region13: #{linear_forward.1} parent=1 // pred_fallthru
      _
    %v17 = vld [vmem:[%s0] sm:$0x1]
    %s18 = sld [smem:[#allocation2]]
    %v19 = vstv %s18
    %v20 = vmul.f32 %v17, %v19
    %s21 = sld [smem:[#allocation3]]
    %v22 = vstv %s21
    %v23 = vadd.f32 %v20, %v22
    %vm24 = vcmask 811008
    %25 = vst.msk [vmem:[#allocation4] sm:$0x1] %vm24, %v23
    // Predicated region
    $region14: #{linear_forward.1} parent=1 // pred_check
      _
    $region15: #{linear_forward.1} parent=1 // pred_check_branch
      %27 = sbr.rel (0) target = $region17
    $region16: #{linear_forward.1} parent=1 // pred_region
      %s29 = ssub.s32 16, 16
      %30 = vsyncadd [#allocation5], %s29
      %s32 = sshll.u32 [#allocation4], 4
      %s33 = int_to_ptr.vmem [resolvable:$true] %s32
      %35 = dma.vmem_to_hbm [thread:$0]  %s33, 16, %s3, [#allocation5]
    $region17: #{linear_forward.1} parent=1 // pred_fallthru
      _
    // Predicated region
    $region18: #{linear_forward.1} parent=1 // pred_check
      _
    $region19: #{linear_forward.1} parent=1 // pred_check_branch
      %37 = sbr.rel (0) target = $region21
    $region20: #{linear_forward.1} parent=1 // pred_region
      %38 = dma.done [#allocation5], 16
    $region21: #{linear_forward.1} parent=1 // pred_fallthru
      _
    %39 = vsyncpa [#allocation5], 1

</llo_original>
